<compile_context>
chip_gen: v5e
topology: v5e:2x2
jax: 0.10.0
libtpu: 0.0.40
codegen_flags: <defaults>
</compile_context>

<pallas_src>
import functools

import jax
import jax.numpy as jnp
from jax.experimental import pallas as pl
from jax.experimental.pallas import tpu as pltpu


# ---------------------------------------------------------------------------
# Kernel
# ---------------------------------------------------------------------------
def _sca_kernel(x_ref, w1ae_ref, w1ao_ref, w1me_ref, w1mo_ref, b1_ref,
                w2e_ref, w2o_ref, b2e_ref, b2o_ref, m_ref, cb_ref, out_ref,
                *, hw, channels):
    """x_ref block: (Bt, C//2, 2*HW).  Lane l < hw -> channel 2r, spatial l;
    lane l >= hw -> channel 2r+1, spatial l-hw (row-major over H, W)."""
    x = x_ref[...].astype(jnp.float32)                       # (Bt, C2, L)
    lane = jax.lax.broadcasted_iota(jnp.int32, x.shape, 2)
    is_lo = lane < hw                                        # even-channel half

    # ---------------- channel attention: per-channel avg/max over HW -------
    inv_hw = 1.0 / hw
    sum_lo = jnp.sum(jnp.where(is_lo, x, 0.0), axis=-1)      # (Bt, C2) even sums
    sum_all = jnp.sum(x, axis=-1)
    sum_hi = sum_all - sum_lo                                # odd sums
    max_lo = jnp.max(jnp.where(is_lo, x, -jnp.inf), axis=-1) # even max
    max_hi = jnp.max(jnp.where(is_lo, -jnp.inf, x), axis=-1) # odd max
    avg_e = sum_lo * inv_hw
    avg_o = sum_hi * inv_hw

    # Linear(2C -> hid) + ReLU; weights pre-split by (avg/max, parity) so no
    # lane concatenate is needed — four accumulating MXU dots instead.
    h = (jnp.dot(avg_e, w1ae_ref[...], preferred_element_type=jnp.float32)
         + jnp.dot(avg_o, w1ao_ref[...], preferred_element_type=jnp.float32)
         + jnp.dot(max_lo, w1me_ref[...], preferred_element_type=jnp.float32)
         + jnp.dot(max_hi, w1mo_ref[...], preferred_element_type=jnp.float32)
         + b1_ref[...])
    h = jnp.maximum(h, 0.0)                                  # (Bt, hid)

    # Linear(hid -> C) + Sigmoid, split by channel parity.
    cw_e = jax.nn.sigmoid(
        jnp.dot(h, w2e_ref[...], preferred_element_type=jnp.float32)
        + b2e_ref[...])                                      # (Bt, C2) even chans
    cw_o = jax.nn.sigmoid(
        jnp.dot(h, w2o_ref[...], preferred_element_type=jnp.float32)
        + b2o_ref[...])                                      # (Bt, C2) odd chans

    # Broadcast channel weights into the (Bt, C2, L) layout (the only small
    # lane->sublane relayouts left).
    cw_bc = jnp.where(is_lo, cw_e[:, :, None], cw_o[:, :, None])
    xw = x * cw_bc                                           # channel-weighted x

    # ---------------- spatial attention -------------------------------------
    # Channel-pool: reduce over the C2 sublanes, then fold the two hw-lane
    # halves with a lane roll so both halves carry the full-channel stats.
    red_sum = jnp.sum(xw, axis=1)                            # (Bt, L)
    red_max = jnp.max(xw, axis=1)                            # (Bt, L)
    folded_sum = red_sum + pltpu.roll(red_sum, shift=hw, axis=1)
    folded_max = jnp.maximum(red_max, pltpu.roll(red_max, shift=hw, axis=1))

    lane2 = jax.lax.broadcasted_iota(jnp.int32, folded_sum.shape, 1)
    comb = jnp.where(lane2 < hw, folded_sum * (1.0 / channels), folded_max)

    # 7x7 "same" conv as ONE dense (Bt, 2*HW) @ (2*HW, 2*HW) MXU matmul whose
    # output columns are duplicated, so the spatial weights land directly in
    # the 128-lane broadcast layout.
    conv = jnp.dot(comb, m_ref[...], preferred_element_type=jnp.float32)
    sw = jax.nn.sigmoid(conv + cb_ref[0, 0])                 # (Bt, L)

    out_ref[...] = (xw * sw[:, None, :]).astype(out_ref.dtype)


# ---------------------------------------------------------------------------
# One-time weight preprocessing (hoisted out of the per-call forward path)
# ---------------------------------------------------------------------------
def _conv_as_matrix(conv_w, H, W):
    """Convert the (1, 2, K, K) 'same' conv weights into a dense (2*H*W, H*W)
    operator M with concat([avg.flat, max.flat]) @ M == conv([avg; max]).
    Exact (conv is linear); the bias is added separately in-kernel."""
    K = conv_w.shape[-1]
    pad = (K - 1) // 2
    HW = H * W
    basis = jnp.eye(2 * HW, dtype=jnp.float32).reshape(2 * HW, 2, H, W)
    cols = jax.lax.conv_general_dilated(
        basis, conv_w.astype(jnp.float32), window_strides=(1, 1),
        padding=((pad, pad), (pad, pad)),
        dimension_numbers=("NCHW", "OIHW", "NCHW"))
    return cols.reshape(2 * HW, HW)


def prepare_params(params, H, W):
    """Preprocess PyTorch-layout weights into kernel-ready arrays.  Call ONCE
    when the params are created (not inside the hot forward path)."""
    # TODO(synk): for large H*W replace the dense conv operator (grows as
    # (H*W)^2) with a banded operator / real conv; exact and cheap at 8x8.
    w1, b1, w2, b2, conv_w, conv_b = params
    hidden, twoC = w1.shape
    C = twoC // 2
    assert C % 2 == 0, "channel-parity layout needs an even channel count"
    f32 = jnp.float32

    w1t = jnp.transpose(w1).astype(f32)            # (2C, hid): rows 0..C-1 avg
    w1_ae = w1t[0:C:2]                             # avg, even channels
    w1_ao = w1t[1:C:2]                             # avg, odd channels
    w1_me = w1t[C + 0:2 * C:2]                     # max, even channels
    w1_mo = w1t[C + 1:2 * C:2]                     # max, odd channels
    b1r = b1.reshape(1, hidden).astype(f32)

    w2t = jnp.transpose(w2).astype(f32)            # (hid, C)
    w2_e = w2t[:, 0:C:2]                           # (hid, C//2) even channels
    w2_o = w2t[:, 1:C:2]                           # (hid, C//2) odd channels
    b2_e = b2[0:C:2].reshape(1, C // 2).astype(f32)
    b2_o = b2[1:C:2].reshape(1, C // 2).astype(f32)

    m64 = _conv_as_matrix(conv_w, H, W)            # (2*HW, HW)
    m128 = jnp.concatenate([m64, m64], axis=1)     # duplicated output columns
    cb = conv_b.reshape(1, 1).astype(f32)          # SMEM scalar

    return dict(w1_ae=w1_ae, w1_ao=w1_ao, w1_me=w1_me, w1_mo=w1_mo, b1=b1r,
                w2_e=w2_e, w2_o=w2_o, b2_e=b2_e, b2_o=b2_o, m=m128, cb=cb)


# ---------------------------------------------------------------------------
# Tiling helpers (generation-aware)
# ---------------------------------------------------------------------------
def _tpu_vmem_capacity_bytes():
    try:
        return int(pltpu.get_tpu_info().vmem_capacity_bytes)
    except Exception:
        return 64 * 1024 * 1024        # conservative (v7x per-core VMEM)


def _choose_batch_tile(batch, per_image_elems, itemsize):
    """Largest divisor of `batch` whose double-buffered in/out blocks plus f32
    intermediates fit ~1/4 of this chip's VMEM.  No forced grid split: a
    single grid step is preferred (the grid is a serial loop on 1-TC chips and
    per-step overhead dominates small blocks)."""
    budget = _tpu_vmem_capacity_bytes() // 4
    per_image_bytes = per_image_elems * max(int(itemsize), 4)
    cap = max(1, budget // (8 * per_image_bytes))
    bt = 1
    for cand in range(1, batch + 1):
        if batch % cand == 0 and cand <= cap:
            bt = cand
    return bt


# ---------------------------------------------------------------------------
# Forward wrapper
# ---------------------------------------------------------------------------
def spatial_channel_attention(x, prep):
    """x: (B, C, H, W).  `prep` = prepare_params(...) output."""
    B, C, H, W = x.shape
    assert C % 2 == 0
    HW = H * W
    C2 = C // 2
    L = 2 * HW
    hidden = prep["w1_ae"].shape[1]

    x_l = x.reshape(B, C2, L)          # free contiguous reshape, lane-dense

    Bt = _choose_batch_tile(B, C2 * L, jnp.dtype(x.dtype).itemsize)
    n_steps = B // Bt

    kernel = functools.partial(_sca_kernel, hw=HW, channels=C)
    full = lambda b: (0, 0)

    out = pl.pallas_call(
        kernel,
        out_shape=jax.ShapeDtypeStruct((B, C2, L), x.dtype),
        grid_spec=pltpu.PrefetchScalarGridSpec(
            num_scalar_prefetch=0,
            grid=(n_steps,),
            in_specs=[
                pl.BlockSpec((Bt, C2, L), lambda b: (b, 0, 0)),
                pl.BlockSpec((C2, hidden), full),
                pl.BlockSpec((C2, hidden), full),
                pl.BlockSpec((C2, hidden), full),
                pl.BlockSpec((C2, hidden), full),
                pl.BlockSpec((1, hidden), full),
                pl.BlockSpec((hidden, C2), full),
                pl.BlockSpec((hidden, C2), full),
                pl.BlockSpec((1, C2), full),
                pl.BlockSpec((1, C2), full),
                pl.BlockSpec((L, L), full),
                pl.BlockSpec(memory_space=pltpu.MemorySpace.SMEM),  # conv bias
            ],
            out_specs=pl.BlockSpec((Bt, C2, L), lambda b: (b, 0, 0)),
        ),
        compiler_params=pltpu.CompilerParams(
            dimension_semantics=("arbitrary",) if n_steps == 1 else ("parallel",),
            vmem_limit_bytes=int(min(_tpu_vmem_capacity_bytes() // 2,
                                     32 * 1024 * 1024))),
    )(x_l, prep["w1_ae"], prep["w1_ao"], prep["w1_me"], prep["w1_mo"],
      prep["b1"], prep["w2_e"], prep["w2_o"], prep["b2_e"], prep["b2_o"],
      prep["m"], prep["cb"])

    return out.reshape(B, C, H, W)


# ---------------------------------------------------------------------------
# Pure-JAX reference mirroring the PyTorch forward exactly
# ---------------------------------------------------------------------------
def reference(x, params):
    w1, b1, w2, b2, conv_w, conv_b = params
    ksize = conv_w.shape[-1]
    pad = (ksize - 1) // 2
    avg_p = jnp.mean(x, axis=(2, 3))
    max_p = jnp.max(x, axis=(2, 3))
    feat = jnp.concatenate([avg_p, max_p], axis=1)                   # (B, 2C)
    h = jnp.maximum(feat @ w1.T + b1, 0.0)
    cwt = jax.nn.sigmoid(h @ w2.T + b2)                              # (B, C)
    x = x * cwt[:, :, None, None]
    avg_s = jnp.mean(x, axis=1, keepdims=True)
    max_s = jnp.max(x, axis=1, keepdims=True)
    sp = jnp.concatenate([avg_s, max_s], axis=1)                     # (B, 2, H, W)
    conv = jax.lax.conv_general_dilated(
        sp, conv_w, window_strides=(1, 1),
        padding=((pad, pad), (pad, pad)),
        dimension_numbers=("NCHW", "OIHW", "NCHW"))
    sw = jax.nn.sigmoid(conv + conv_b[None, :, None, None])
    return x * sw


if __name__ == "__main__":
    B, C, H, W = 8, 16, 8, 8          # chess board: 8x8 spatial
    reduction = 8
    hidden = C // reduction           # 2

    key = jax.random.PRNGKey(0)
    ks = jax.random.split(key, 7)
    x = jax.random.normal(ks[0], (B, C, H, W), jnp.float32)
    w1 = jax.random.normal(ks[1], (hidden, 2 * C), jnp.float32) * 0.2
    b1 = jax.random.normal(ks[2], (hidden,), jnp.float32) * 0.1
    w2 = jax.random.normal(ks[3], (C, hidden), jnp.float32) * 0.2
    b2 = jax.random.normal(ks[4], (C,), jnp.float32) * 0.1
    conv_w = jax.random.normal(ks[5], (1, 2, 7, 7), jnp.float32) * 0.2
    conv_b = jax.random.normal(ks[6], (1,), jnp.float32) * 0.1
    params = (w1, b1, w2, b2, conv_w, conv_b)

    # One-time preprocessing, hoisted out of the per-call forward path.
    prep = prepare_params(params, H, W)
    prep = jax.tree_util.tree_map(jax.block_until_ready, prep)

    fwd = jax.jit(spatial_channel_attention)
    out = jax.block_until_ready(fwd(x, prep))

    ref = reference(x, params)
    assert out.shape == (B, C, H, W)
    max_err = float(jnp.max(jnp.abs(out - ref)))
    if max_err > 5e-4:
        raise AssertionError(f"kernel mismatch vs reference: max abs err {max_err}")
    print("KERNEL_OK")
</pallas_src>

<mosaic_0001>
module attributes {stable_mosaic.version = 11 : i64} {
  func.func @_sca_kernel(%arg0: i32, %arg1: memref<8x8x128xf32, #tpu.memory_space<vmem>>, %arg2: memref<8x2xf32, #tpu.memory_space<vmem>>, %arg3: memref<8x2xf32, #tpu.memory_space<vmem>>, %arg4: memref<8x2xf32, #tpu.memory_space<vmem>>, %arg5: memref<8x2xf32, #tpu.memory_space<vmem>>, %arg6: memref<1x2xf32, #tpu.memory_space<vmem>>, %arg7: memref<2x8xf32, #tpu.memory_space<vmem>>, %arg8: memref<2x8xf32, #tpu.memory_space<vmem>>, %arg9: memref<1x8xf32, #tpu.memory_space<vmem>>, %arg10: memref<1x8xf32, #tpu.memory_space<vmem>>, %arg11: memref<128x128xf32, #tpu.memory_space<vmem>>, %arg12: memref<1x1xf32, #tpu.memory_space<smem>>, %arg13: memref<8x8x128xf32, #tpu.memory_space<vmem>>) attributes {dimension_semantics = [#tpu.dimension_semantics<arbitrary>], iteration_bounds = array<i64: 1>, scalar_prefetch = 0 : i64, scratch_operands = 0 : i64, tpu.core_type = #tpu.core_type<tc>, window_params = [{transform_indices = @transform_0, window_bounds = array<i64: 8, 8, 128>}, {pipeline_mode = #tpu.pipeline_mode<synchronous>, transform_indices = @transform_1, window_bounds = array<i64: 8, 2>}, {pipeline_mode = #tpu.pipeline_mode<synchronous>, transform_indices = @transform_2, window_bounds = array<i64: 8, 2>}, {pipeline_mode = #tpu.pipeline_mode<synchronous>, transform_indices = @transform_3, window_bounds = array<i64: 8, 2>}, {pipeline_mode = #tpu.pipeline_mode<synchronous>, transform_indices = @transform_4, window_bounds = array<i64: 8, 2>}, {pipeline_mode = #tpu.pipeline_mode<synchronous>, transform_indices = @transform_5, window_bounds = array<i64: 1, 2>}, {pipeline_mode = #tpu.pipeline_mode<synchronous>, transform_indices = @transform_6, window_bounds = array<i64: 2, 8>}, {pipeline_mode = #tpu.pipeline_mode<synchronous>, transform_indices = @transform_7, window_bounds = array<i64: 2, 8>}, {pipeline_mode = #tpu.pipeline_mode<synchronous>, transform_indices = @transform_8, window_bounds = array<i64: 1, 8>}, {pipeline_mode = #tpu.pipeline_mode<synchronous>, transform_indices = @transform_9, window_bounds = array<i64: 1, 8>}, {pipeline_mode = #tpu.pipeline_mode<synchronous>, transform_indices = @transform_10, window_bounds = array<i64: 128, 128>}, {transform_indices = @transform_11, window_bounds = array<i64: 1, 1>}, {transform_indices = @transform_12, window_bounds = array<i64: 8, 8, 128>}]} {
    %c0 = arith.constant 0 : index
    %c0_0 = arith.constant 0 : index
    %c0_1 = arith.constant 0 : index
    %0 = vector.load %arg1[%c0, %c0_0, %c0_1] : memref<8x8x128xf32, #tpu.memory_space<vmem>>, vector<8x8x128xf32>
    %1 = tpu.iota {dimensions = array<i32: 2>} : vector<8x8x128xi32>
    %c64_i32 = arith.constant 64 : i32
    %2 = vector.broadcast %c64_i32 : i32 to vector<8x8x128xi32>
    %3 = arith.cmpi slt, %1, %2 : vector<8x8x128xi32>
    %cst = arith.constant 0.000000e+00 : f32
    %4 = vector.broadcast %cst : f32 to vector<8x8x128xf32>
    %5 = arith.select %3, %0, %4 : vector<8x8x128xi1>, vector<8x8x128xf32>
    %cst_2 = arith.constant dense<0.000000e+00> : vector<8x8xf32>
    %6 = vector.multi_reduction <add>, %5, %cst_2 [2] : vector<8x8x128xf32> to vector<8x8xf32>
    %cst_3 = arith.constant dense<0.000000e+00> : vector<8x8xf32>
    %7 = vector.multi_reduction <add>, %0, %cst_3 [2] : vector<8x8x128xf32> to vector<8x8xf32>
    %8 = arith.subf %7, %6 : vector<8x8xf32>
    %cst_4 = arith.constant 0xFF800000 : f32
    %9 = vector.broadcast %cst_4 : f32 to vector<8x8x128xf32>
    %10 = arith.select %3, %0, %9 : vector<8x8x128xi1>, vector<8x8x128xf32>
    %cst_5 = arith.constant dense<0xFF800000> : vector<8x8xf32>
    %11 = vector.multi_reduction <maximumf>, %10, %cst_5 [2] : vector<8x8x128xf32> to vector<8x8xf32>
    %cst_6 = arith.constant 0xFF800000 : f32
    %12 = vector.broadcast %cst_6 : f32 to vector<8x8x128xf32>
    %13 = arith.select %3, %12, %0 : vector<8x8x128xi1>, vector<8x8x128xf32>
    %cst_7 = arith.constant dense<0xFF800000> : vector<8x8xf32>
    %14 = vector.multi_reduction <maximumf>, %13, %cst_7 [2] : vector<8x8x128xf32> to vector<8x8xf32>
    %cst_8 = arith.constant 1.562500e-02 : f32
    %15 = vector.broadcast %cst_8 : f32 to vector<8x8xf32>
    %16 = arith.mulf %6, %15 : vector<8x8xf32>
    %cst_9 = arith.constant 1.562500e-02 : f32
    %17 = vector.broadcast %cst_9 : f32 to vector<8x8xf32>
    %18 = arith.mulf %8, %17 : vector<8x8xf32>
    %c0_10 = arith.constant 0 : index
    %c0_11 = arith.constant 0 : index
    %19 = vector.load %arg2[%c0_10, %c0_11] : memref<8x2xf32, #tpu.memory_space<vmem>>, vector<8x2xf32>
    %cst_12 = arith.constant dense<0.000000e+00> : vector<8x2xf32>
    %20 = tpu.matmul %16, %19, %cst_12 {dimension_numbers = #tpu.dot_dimension_numbers<[1], [0], [0], [1], [0, 0, 1, 1], [], []>} : vector<8x8xf32>, vector<8x2xf32>, vector<8x2xf32> -> vector<8x2xf32>
    %c0_13 = arith.constant 0 : index
    %c0_14 = arith.constant 0 : index
    %21 = vector.load %arg3[%c0_13, %c0_14] : memref<8x2xf32, #tpu.memory_space<vmem>>, vector<8x2xf32>
    %cst_15 = arith.constant dense<0.000000e+00> : vector<8x2xf32>
    %22 = tpu.matmul %18, %21, %cst_15 {dimension_numbers = #tpu.dot_dimension_numbers<[1], [0], [0], [1], [0, 0, 1, 1], [], []>} : vector<8x8xf32>, vector<8x2xf32>, vector<8x2xf32> -> vector<8x2xf32>
    %23 = arith.addf %20, %22 : vector<8x2xf32>
    %c0_16 = arith.constant 0 : index
    %c0_17 = arith.constant 0 : index
    %24 = vector.load %arg4[%c0_16, %c0_17] : memref<8x2xf32, #tpu.memory_space<vmem>>, vector<8x2xf32>
    %cst_18 = arith.constant dense<0.000000e+00> : vector<8x2xf32>
    %25 = tpu.matmul %11, %24, %cst_18 {dimension_numbers = #tpu.dot_dimension_numbers<[1], [0], [0], [1], [0, 0, 1, 1], [], []>} : vector<8x8xf32>, vector<8x2xf32>, vector<8x2xf32> -> vector<8x2xf32>
    %26 = arith.addf %23, %25 : vector<8x2xf32>
    %c0_19 = arith.constant 0 : index
    %c0_20 = arith.constant 0 : index
    %27 = vector.load %arg5[%c0_19, %c0_20] : memref<8x2xf32, #tpu.memory_space<vmem>>, vector<8x2xf32>
    %cst_21 = arith.constant dense<0.000000e+00> : vector<8x2xf32>
    %28 = tpu.matmul %14, %27, %cst_21 {dimension_numbers = #tpu.dot_dimension_numbers<[1], [0], [0], [1], [0, 0, 1, 1], [], []>} : vector<8x8xf32>, vector<8x2xf32>, vector<8x2xf32> -> vector<8x2xf32>
    %29 = arith.addf %26, %28 : vector<8x2xf32>
    %c0_22 = arith.constant 0 : index
    %c0_23 = arith.constant 0 : index
    %30 = vector.load %arg6[%c0_22, %c0_23] : memref<1x2xf32, #tpu.memory_space<vmem>>, vector<1x2xf32>
    %31 = vector.broadcast %30 : vector<1x2xf32> to vector<8x2xf32>
    %32 = arith.addf %29, %31 : vector<8x2xf32>
    %cst_24 = arith.constant 0.000000e+00 : f32
    %33 = vector.broadcast %cst_24 : f32 to vector<8x2xf32>
    %34 = arith.maximumf %32, %33 : vector<8x2xf32>
    %c0_25 = arith.constant 0 : index
    %c0_26 = arith.constant 0 : index
    %35 = vector.load %arg7[%c0_25, %c0_26] : memref<2x8xf32, #tpu.memory_space<vmem>>, vector<2x8xf32>
    %cst_27 = arith.constant dense<0.000000e+00> : vector<8x8xf32>
    %36 = tpu.matmul %34, %35, %cst_27 {dimension_numbers = #tpu.dot_dimension_numbers<[1], [0], [0], [1], [0, 0, 1, 1], [], []>} : vector<8x2xf32>, vector<2x8xf32>, vector<8x8xf32> -> vector<8x8xf32>
    %c0_28 = arith.constant 0 : index
    %c0_29 = arith.constant 0 : index
    %37 = vector.load %arg9[%c0_28, %c0_29] : memref<1x8xf32, #tpu.memory_space<vmem>>, vector<1x8xf32>
    %38 = vector.broadcast %37 : vector<1x8xf32> to vector<8x8xf32>
    %39 = arith.addf %36, %38 : vector<8x8xf32>
    %40 = arith.negf %39 : vector<8x8xf32>
    %41 = math.exp %40 : vector<8x8xf32>
    %cst_30 = arith.constant 1.000000e+00 : f32
    %42 = vector.broadcast %cst_30 : f32 to vector<8x8xf32>
    %43 = arith.addf %42, %41 : vector<8x8xf32>
    %44 = arith.divf %42, %43 : vector<8x8xf32>
    %c0_31 = arith.constant 0 : index
    %c0_32 = arith.constant 0 : index
    %45 = vector.load %arg8[%c0_31, %c0_32] : memref<2x8xf32, #tpu.memory_space<vmem>>, vector<2x8xf32>
    %cst_33 = arith.constant dense<0.000000e+00> : vector<8x8xf32>
    %46 = tpu.matmul %34, %45, %cst_33 {dimension_numbers = #tpu.dot_dimension_numbers<[1], [0], [0], [1], [0, 0, 1, 1], [], []>} : vector<8x2xf32>, vector<2x8xf32>, vector<8x8xf32> -> vector<8x8xf32>
    %c0_34 = arith.constant 0 : index
    %c0_35 = arith.constant 0 : index
    %47 = vector.load %arg10[%c0_34, %c0_35] : memref<1x8xf32, #tpu.memory_space<vmem>>, vector<1x8xf32>
    %48 = vector.broadcast %47 : vector<1x8xf32> to vector<8x8xf32>
    %49 = arith.addf %46, %48 : vector<8x8xf32>
    %50 = arith.negf %49 : vector<8x8xf32>
    %51 = math.exp %50 : vector<8x8xf32>
    %cst_36 = arith.constant 1.000000e+00 : f32
    %52 = vector.broadcast %cst_36 : f32 to vector<8x8xf32>
    %53 = arith.addf %52, %51 : vector<8x8xf32>
    %54 = arith.divf %52, %53 : vector<8x8xf32>
    %55 = vector.shape_cast %44 : vector<8x8xf32> to vector<8x8x1xf32>
    %56 = vector.shape_cast %54 : vector<8x8xf32> to vector<8x8x1xf32>
    %57 = vector.shape_cast %55 : vector<8x8x1xf32> to vector<8x8x1xf32>
    %58 = vector.broadcast %57 : vector<8x8x1xf32> to vector<8x8x128xf32>
    %59 = vector.shape_cast %56 : vector<8x8x1xf32> to vector<8x8x1xf32>
    %60 = vector.broadcast %59 : vector<8x8x1xf32> to vector<8x8x128xf32>
    %61 = arith.select %3, %58, %60 : vector<8x8x128xi1>, vector<8x8x128xf32>
    %62 = arith.mulf %0, %61 : vector<8x8x128xf32>
    %cst_37 = arith.constant dense<0.000000e+00> : vector<8x128xf32>
    %63 = vector.multi_reduction <add>, %62, %cst_37 [1] : vector<8x8x128xf32> to vector<8x128xf32>
    %cst_38 = arith.constant dense<0xFF800000> : vector<8x128xf32>
    %64 = vector.multi_reduction <maximumf>, %62, %cst_38 [1] : vector<8x8x128xf32> to vector<8x128xf32>
    %c64_i32_39 = arith.constant 64 : i32
    %65 = tpu.dynamic_rotate %63 by %c64_i32_39 dim 1 : vector<8x128xf32>, i32 -> vector<8x128xf32>
    %66 = arith.addf %63, %65 : vector<8x128xf32>
    %c64_i32_40 = arith.constant 64 : i32
    %67 = tpu.dynamic_rotate %64 by %c64_i32_40 dim 1 : vector<8x128xf32>, i32 -> vector<8x128xf32>
    %68 = arith.maximumf %64, %67 : vector<8x128xf32>
    %69 = tpu.iota {dimensions = array<i32: 1>} : vector<8x128xi32>
    %c64_i32_41 = arith.constant 64 : i32
    %70 = vector.broadcast %c64_i32_41 : i32 to vector<8x128xi32>
    %71 = arith.cmpi slt, %69, %70 : vector<8x128xi32>
    %cst_42 = arith.constant 6.250000e-02 : f32
    %72 = vector.broadcast %cst_42 : f32 to vector<8x128xf32>
    %73 = arith.mulf %66, %72 : vector<8x128xf32>
    %74 = arith.select %71, %73, %68 : vector<8x128xi1>, vector<8x128xf32>
    %c0_43 = arith.constant 0 : index
    %c0_44 = arith.constant 0 : index
    %75 = vector.load %arg11[%c0_43, %c0_44] : memref<128x128xf32, #tpu.memory_space<vmem>>, vector<128x128xf32>
    %cst_45 = arith.constant dense<0.000000e+00> : vector<8x128xf32>
    %76 = tpu.matmul %74, %75, %cst_45 {dimension_numbers = #tpu.dot_dimension_numbers<[1], [0], [0], [1], [0, 0, 1, 1], [], []>} : vector<8x128xf32>, vector<128x128xf32>, vector<8x128xf32> -> vector<8x128xf32>
    %c0_46 = arith.constant 0 : index
    %c0_47 = arith.constant 0 : index
    %77 = memref.load %arg12[%c0_46, %c0_47] : memref<1x1xf32, #tpu.memory_space<smem>>
    %78 = vector.broadcast %77 : f32 to vector<8x128xf32>
    %79 = arith.addf %76, %78 : vector<8x128xf32>
    %80 = arith.negf %79 : vector<8x128xf32>
    %81 = math.exp %80 : vector<8x128xf32>
    %cst_48 = arith.constant 1.000000e+00 : f32
    %82 = vector.broadcast %cst_48 : f32 to vector<8x128xf32>
    %83 = arith.addf %82, %81 : vector<8x128xf32>
    %84 = arith.divf %82, %83 : vector<8x128xf32>
    %85 = vector.shape_cast %84 : vector<8x128xf32> to vector<8x1x128xf32>
    %86 = vector.broadcast %85 : vector<8x1x128xf32> to vector<8x8x128xf32>
    %87 = arith.mulf %62, %86 : vector<8x8x128xf32>
    %c0_49 = arith.constant 0 : index
    %c0_50 = arith.constant 0 : index
    %c0_51 = arith.constant 0 : index
    %88 = vector.load %arg13[%c0_49, %c0_50, %c0_51] : memref<8x8x128xf32, #tpu.memory_space<vmem>>, vector<8x8x128xf32>
    tpu.vector_store %arg13[%c0_49, %c0_50, %c0_51], %87 {strides = array<i32>} : memref<8x8x128xf32, #tpu.memory_space<vmem>>, vector<8x8x128xf32>,
    return
  }
  func.func @transform_0(%arg0: i32) -> (i32, i32, i32) {
    %c0_i32 = arith.constant 0 : i32
    %c0_i32_0 = arith.constant 0 : i32
    %c0_i32_1 = arith.constant 0 : i32
    return %arg0, %c0_i32, %c0_i32_0 : i32, i32, i32
  }
  func.func @transform_1(%arg0: i32) -> (i32, i32) {
    %c0_i32 = arith.constant 0 : i32
    %c0_i32_0 = arith.constant 0 : i32
    %c0_i32_1 = arith.constant 0 : i32
    return %c0_i32, %c0_i32_0 : i32, i32
  }
  func.func @transform_2(%arg0: i32) -> (i32, i32) {
    %c0_i32 = arith.constant 0 : i32
    %c0_i32_0 = arith.constant 0 : i32
    %c0_i32_1 = arith.constant 0 : i32
    return %c0_i32, %c0_i32_0 : i32, i32
  }
  func.func @transform_3(%arg0: i32) -> (i32, i32) {
    %c0_i32 = arith.constant 0 : i32
    %c0_i32_0 = arith.constant 0 : i32
    %c0_i32_1 = arith.constant 0 : i32
    return %c0_i32, %c0_i32_0 : i32, i32
  }
  func.func @transform_4(%arg0: i32) -> (i32, i32) {
    %c0_i32 = arith.constant 0 : i32
    %c0_i32_0 = arith.constant 0 : i32
    %c0_i32_1 = arith.constant 0 : i32
    return %c0_i32, %c0_i32_0 : i32, i32
  }
  func.func @transform_5(%arg0: i32) -> (i32, i32) {
    %c0_i32 = arith.constant 0 : i32
    %c0_i32_0 = arith.constant 0 : i32
    %c0_i32_1 = arith.constant 0 : i32
    return %c0_i32, %c0_i32_0 : i32, i32
  }
  func.func @transform_6(%arg0: i32) -> (i32, i32) {
    %c0_i32 = arith.constant 0 : i32
    %c0_i32_0 = arith.constant 0 : i32
    %c0_i32_1 = arith.constant 0 : i32
    return %c0_i32, %c0_i32_0 : i32, i32
  }
  func.func @transform_7(%arg0: i32) -> (i32, i32) {
    %c0_i32 = arith.constant 0 : i32
    %c0_i32_0 = arith.constant 0 : i32
    %c0_i32_1 = arith.constant 0 : i32
    return %c0_i32, %c0_i32_0 : i32, i32
  }
  func.func @transform_8(%arg0: i32) -> (i32, i32) {
    %c0_i32 = arith.constant 0 : i32
    %c0_i32_0 = arith.constant 0 : i32
    %c0_i32_1 = arith.constant 0 : i32
    return %c0_i32, %c0_i32_0 : i32, i32
  }
  func.func @transform_9(%arg0: i32) -> (i32, i32) {
    %c0_i32 = arith.constant 0 : i32
    %c0_i32_0 = arith.constant 0 : i32
    %c0_i32_1 = arith.constant 0 : i32
    return %c0_i32, %c0_i32_0 : i32, i32
  }
  func.func @transform_10(%arg0: i32) -> (i32, i32) {
    %c0_i32 = arith.constant 0 : i32
    %c0_i32_0 = arith.constant 0 : i32
    %c0_i32_1 = arith.constant 0 : i32
    return %c0_i32, %c0_i32_0 : i32, i32
  }
  func.func @transform_11(%arg0: i32) -> (i32, i32) {
    %c0_i32 = arith.constant 0 : i32
    %c0_i32_0 = arith.constant 0 : i32
    %c0_i32_1 = arith.constant 0 : i32
    return %c0_i32, %c0_i32_0 : i32, i32
  }
  func.func @transform_12(%arg0: i32) -> (i32, i32, i32) {
    %c0_i32 = arith.constant 0 : i32
    %c0_i32_0 = arith.constant 0 : i32
    %c0_i32_1 = arith.constant 0 : i32
    return %arg0, %c0_i32, %c0_i32_0 : i32, i32, i32
  }
}

</mosaic_0001>

<llo_original>
// kernel: spatial_channel_attention.1
$region0: #{spatial_channel_attention.1}
  #allocation0 [shape = 'u32[]', space=smem, size = 0x4, offset = 0x4, fixed_abs, tag = 'smem constant byte address 0x4 - core index']
  #allocation1 [shape = 'u32[72,128]{1,0:T(1,128)}', space=vmem, size = 0x9000, scoped, tag = 'internal scratch']
  #allocation2 [shape = 'f32[1,1]{1,0:T(1,128)S(6)}', space=smem, size = 0x200, scoped, tag = 'scoped memory for spatial_channel_attention.1']
  %s0 = inlined_call_operand.vmem [shape: f32[8,8,128], index: 0, kind: input, shape index: {}]
  %s1 = inlined_call_operand.vmem [shape: f32[8,2], index: 1, kind: input, shape index: {}]
  %s2 = inlined_call_operand.vmem [shape: f32[8,2], index: 2, kind: input, shape index: {}]
  %s3 = inlined_call_operand.vmem [shape: f32[8,2], index: 3, kind: input, shape index: {}]
  %s4 = inlined_call_operand.vmem [shape: f32[8,2], index: 4, kind: input, shape index: {}]
  %s5 = inlined_call_operand.vmem [shape: f32[1,2], index: 5, kind: input, shape index: {}]
  %s6 = inlined_call_operand.vmem [shape: f32[2,8], index: 6, kind: input, shape index: {}]
  %s7 = inlined_call_operand.vmem [shape: f32[2,8], index: 7, kind: input, shape index: {}]
  %s8 = inlined_call_operand.vmem [shape: f32[1,8], index: 8, kind: input, shape index: {}]
  %s9 = inlined_call_operand.vmem [shape: f32[1,8], index: 9, kind: input, shape index: {}]
  %s10 = inlined_call_operand.vmem [shape: f32[128,128], index: 10, kind: input, shape index: {}]
  %s11 = inlined_call_operand.<no memory space> [shape: f32[1,1], index: 11, kind: input, shape index: {}]
  %s12 = inlined_call_operand.vmem [shape: f32[8,8,128], index: 12, kind: output, shape index: {}]
  %s13 = sld [smem:[#allocation0]]
  $region58: #{spatial_channel_attention.1} parent=0
    _
  %s15 = ssub.s32 1, %s13
  %s16 = scalar_select 0, %s15, %s13
  %17 = sst [smem:[#allocation2]] %s11
  // Predicated region
  $region2: #{spatial_channel_attention.1} parent=0 // pred_check
    _
  $region3: #{spatial_channel_attention.1} parent=0 // pred_check_branch
    %19 = sbr.rel (0) target = $region5
  $region4: #{spatial_channel_attention.1} parent=0 // pred_region
    _
  $region5: #{spatial_channel_attention.1} parent=0 // pred_fallthru
    _
  // Predicated region
  $region6: #{spatial_channel_attention.1} parent=0 // pred_check
    _
  $region7: #{spatial_channel_attention.1} parent=0 // pred_check_branch
    %21 = sbr.rel (0) target = $region9
  $region8: #{spatial_channel_attention.1} parent=0 // pred_region
    _
  $region9: #{spatial_channel_attention.1} parent=0 // pred_fallthru
    _
  // Predicated region
  $region10: #{spatial_channel_attention.1} parent=0 // pred_check
    _
  $region11: #{spatial_channel_attention.1} parent=0 // pred_check_branch
    %23 = sbr.rel (0) target = $region13
  $region12: #{spatial_channel_attention.1} parent=0 // pred_region
    _
  $region13: #{spatial_channel_attention.1} parent=0 // pred_fallthru
    _
  // Predicated region
  $region14: #{spatial_channel_attention.1} parent=0 // pred_check
    _
  $region15: #{spatial_channel_attention.1} parent=0 // pred_check_branch
    %25 = sbr.rel (0) target = $region17
  $region16: #{spatial_channel_attention.1} parent=0 // pred_region
    _
  $region17: #{spatial_channel_attention.1} parent=0 // pred_fallthru
    _
  // Predicated region
  $region18: #{spatial_channel_attention.1} parent=0 // pred_check
    _
  $region19: #{spatial_channel_attention.1} parent=0 // pred_check_branch
    %27 = sbr.rel (0) target = $region21
  $region20: #{spatial_channel_attention.1} parent=0 // pred_region
    _
  $region21: #{spatial_channel_attention.1} parent=0 // pred_fallthru
    _
  // Predicated region
  $region22: #{spatial_channel_attention.1} parent=0 // pred_check
    _
  $region23: #{spatial_channel_attention.1} parent=0 // pred_check_branch
    %29 = sbr.rel (0) target = $region25
  $region24: #{spatial_channel_attention.1} parent=0 // pred_region
    _
  $region25: #{spatial_channel_attention.1} parent=0 // pred_fallthru
    _
  // Predicated region
  $region26: #{spatial_channel_attention.1} parent=0 // pred_check
    _
  $region27: #{spatial_channel_attention.1} parent=0 // pred_check_branch
    %31 = sbr.rel (0) target = $region29
  $region28: #{spatial_channel_attention.1} parent=0 // pred_region
    _
  $region29: #{spatial_channel_attention.1} parent=0 // pred_fallthru
    _
  // Predicated region
  $region30: #{spatial_channel_attention.1} parent=0 // pred_check
    _
  $region31: #{spatial_channel_attention.1} parent=0 // pred_check_branch
    %33 = sbr.rel (0) target = $region33
  $region32: #{spatial_channel_attention.1} parent=0 // pred_region
    _
  $region33: #{spatial_channel_attention.1} parent=0 // pred_fallthru
    _
  // Predicated region
  $region34: #{spatial_channel_attention.1} parent=0 // pred_check
    _
  $region35: #{spatial_channel_attention.1} parent=0 // pred_check_branch
    %35 = sbr.rel (0) target = $region37
  $region36: #{spatial_channel_attention.1} parent=0 // pred_region
    _
  $region37: #{spatial_channel_attention.1} parent=0 // pred_fallthru
    _
  // Predicated region
  $region38: #{spatial_channel_attention.1} parent=0 // pred_check
    _
  $region39: #{spatial_channel_attention.1} parent=0 // pred_check_branch
    %37 = sbr.rel (0) target = $region41
  $region40: #{spatial_channel_attention.1} parent=0 // pred_region
    _
  $region41: #{spatial_channel_attention.1} parent=0 // pred_fallthru
    _
  // Predicated region
  $region42: #{spatial_channel_attention.1} parent=0 // pred_check
    _
  $region43: #{spatial_channel_attention.1} parent=0 // pred_check_branch
    %39 = sbr.rel (0) target = $region45
  $region44: #{spatial_channel_attention.1} parent=0 // pred_region
    _
  $region45: #{spatial_channel_attention.1} parent=0 // pred_fallthru
    _
  // Predicated region
  $region46: #{spatial_channel_attention.1} parent=0 // pred_check
    _
  $region47: #{spatial_channel_attention.1} parent=0 // pred_check_branch
    %41 = sbr.rel (0) target = $region49
  $region48: #{spatial_channel_attention.1} parent=0 // pred_region
    _
  $region49: #{spatial_channel_attention.1} parent=0 // pred_fallthru
    _
  %v42 = vld [vmem:[%s0] sm:$0xff]
  %v43 = vld [vmem:[%s0 + $0x8] sm:$0xff]
  %v44 = vld [vmem:[%s0 + $0x10] sm:$0xff]
  %v45 = vld [vmem:[%s0 + $0x18] sm:$0xff]
  %v46 = vld [vmem:[%s0 + $0x20] sm:$0xff]
  %v47 = vld [vmem:[%s0 + $0x28] sm:$0xff]
  %v48 = vld [vmem:[%s0 + $0x30] sm:$0xff]
  %v49 = vld [vmem:[%s0 + $0x38] sm:$0xff]
  %v50 = vlaneseq
  %v51 = vand.u32 %v50, 127
  %vm52 = vcmp.lt.s32.totalorder %v51, 64
  %v53 = vsel %vm52, %v42, 0.0
  %v54 = vsel %vm52, %v43, 0.0
  %v55 = vsel %vm52, %v44, 0.0
  %v56 = vsel %vm52, %v45, 0.0
  %v57 = vsel %vm52, %v46, 0.0
  %v58 = vsel %vm52, %v47, 0.0
  %v59 = vsel %vm52, %v48, 0.0
  %v60 = vsel %vm52, %v49, 0.0
  %61 = vadd.xlane.f32.xlu0 %v53
  %v62 = vpop.xlane.xlu0 %61
  %63 = vadd.xlane.f32.xlu0 %v54
  %v64 = vpop.xlane.xlu0 %63
  %65 = vadd.xlane.f32.xlu0 %v55
  %v66 = vpop.xlane.xlu0 %65
  %67 = vadd.xlane.f32.xlu0 %v56
  %v68 = vpop.xlane.xlu0 %67
  %69 = vadd.xlane.f32.xlu0 %v57
  %v70 = vpop.xlane.xlu0 %69
  %71 = vadd.xlane.f32.xlu0 %v58
  %v72 = vpop.xlane.xlu0 %71
  %73 = vadd.xlane.f32.xlu0 %v59
  %v74 = vpop.xlane.xlu0 %73
  %75 = vadd.xlane.f32.xlu0 %v60
  %v76 = vpop.xlane.xlu0 %75
  %77 = vadd.xlane.f32.xlu0 %v42
  %v78 = vpop.xlane.xlu0 %77
  %79 = vadd.xlane.f32.xlu0 %v43
  %v80 = vpop.xlane.xlu0 %79
  %81 = vadd.xlane.f32.xlu0 %v44
  %v82 = vpop.xlane.xlu0 %81
  %83 = vadd.xlane.f32.xlu0 %v45
  %v84 = vpop.xlane.xlu0 %83
  %85 = vadd.xlane.f32.xlu0 %v46
  %v86 = vpop.xlane.xlu0 %85
  %87 = vadd.xlane.f32.xlu0 %v47
  %v88 = vpop.xlane.xlu0 %87
  %89 = vadd.xlane.f32.xlu0 %v48
  %v90 = vpop.xlane.xlu0 %89
  %91 = vadd.xlane.f32.xlu0 %v49
  %v92 = vpop.xlane.xlu0 %91
  %v93 = vsub.f32 %v78, %v62
  %v94 = vsub.f32 %v80, %v64
  %v95 = vsub.f32 %v82, %v66
  %v96 = vsub.f32 %v84, %v68
  %v97 = vsub.f32 %v86, %v70
  %v98 = vsub.f32 %v88, %v72
  %v99 = vsub.f32 %v90, %v74
  %v100 = vsub.f32 %v92, %v76
  %v101 = vsel %vm52, %v42, -inf
  %v102 = vsel %vm52, %v43, -inf
  %v103 = vsel %vm52, %v44, -inf
  %v104 = vsel %vm52, %v45, -inf
  %v105 = vsel %vm52, %v46, -inf
  %v106 = vsel %vm52, %v47, -inf
  %v107 = vsel %vm52, %v48, -inf
  %v108 = vsel %vm52, %v49, -inf
  %109 = vmax.xlane.f32.xlu0 %v101
  %v110 = vpop.xlane.xlu0 %109
  %111 = vmax.xlane.f32.xlu0 %v102
  %v112 = vpop.xlane.xlu0 %111
  %113 = vmax.xlane.f32.xlu0 %v103
  %v114 = vpop.xlane.xlu0 %113
  %115 = vmax.xlane.f32.xlu0 %v104
  %v116 = vpop.xlane.xlu0 %115
  %117 = vmax.xlane.f32.xlu0 %v105
  %v118 = vpop.xlane.xlu0 %117
  %119 = vmax.xlane.f32.xlu0 %v106
  %v120 = vpop.xlane.xlu0 %119
  %121 = vmax.xlane.f32.xlu0 %v107
  %v122 = vpop.xlane.xlu0 %121
  %123 = vmax.xlane.f32.xlu0 %v108
  %v124 = vpop.xlane.xlu0 %123
  %v125 = vsel %vm52, -inf, %v42
  %v126 = vsel %vm52, -inf, %v43
  %v127 = vsel %vm52, -inf, %v44
  %v128 = vsel %vm52, -inf, %v45
  %v129 = vsel %vm52, -inf, %v46
  %v130 = vsel %vm52, -inf, %v47
  %v131 = vsel %vm52, -inf, %v48
  %v132 = vsel %vm52, -inf, %v49
  %133 = vmax.xlane.f32.xlu0 %v125
  %v134 = vpop.xlane.xlu0 %133
  %135 = vmax.xlane.f32.xlu0 %v126
  %v136 = vpop.xlane.xlu0 %135
  %137 = vmax.xlane.f32.xlu0 %v127
  %v138 = vpop.xlane.xlu0 %137
  %139 = vmax.xlane.f32.xlu0 %v128
  %v140 = vpop.xlane.xlu0 %139
  %141 = vmax.xlane.f32.xlu0 %v129
  %v142 = vpop.xlane.xlu0 %141
  %143 = vmax.xlane.f32.xlu0 %v130
  %v144 = vpop.xlane.xlu0 %143
  %145 = vmax.xlane.f32.xlu0 %v131
  %v146 = vpop.xlane.xlu0 %145
  %147 = vmax.xlane.f32.xlu0 %v132
  %v148 = vpop.xlane.xlu0 %147
  %v149 = vmul.f32 %v62, 0.015625
  %v150 = vmul.f32 %v64, 0.015625
  %v151 = vmul.f32 %v66, 0.015625
  %v152 = vmul.f32 %v68, 0.015625
  %v153 = vmul.f32 %v70, 0.015625
  %v154 = vmul.f32 %v72, 0.015625
  %v155 = vmul.f32 %v74, 0.015625
  %v156 = vmul.f32 %v76, 0.015625
  %v157 = vmul.f32 %v93, 0.015625
  %v158 = vmul.f32 %v94, 0.015625
  %v159 = vmul.f32 %v95, 0.015625
  %v160 = vmul.f32 %v96, 0.015625
  %v161 = vmul.f32 %v97, 0.015625
  %v162 = vmul.f32 %v98, 0.015625
  %v163 = vmul.f32 %v99, 0.015625
  %v164 = vmul.f32 %v100, 0.015625
  %v165 = vld [vmem:[%s1] sm:$0xff]
  %v166 = vld [vmem:[%s2] sm:$0xff]
  %v175 = vperm.slane %v157, %v51
  %v176 = vperm.slane %v158, %v51
  %v177 = vperm.slane %v159, %v51
  %v178 = vperm.slane %v160, %v51
  %v179 = vperm.slane %v161, %v51
  %v180 = vperm.slane %v162, %v51
  %v181 = vperm.slane %v163, %v51
  %v182 = vperm.slane %v164, %v51
  %vm183 = vcmask 1041409
  %v184 = vsel %vm183, %v176, %v175
  %vm185 = vcmask 1042434
  %v186 = vsel %vm185, %v177, %v184
  %vm187 = vcmask 1043459
  %v188 = vsel %vm187, %v178, %v186
  %vm189 = vcmask 1044484
  %v190 = vsel %vm189, %v179, %v188
  %vm191 = vcmask 1045509
  %v192 = vsel %vm191, %v180, %v190
  %vm193 = vcmask 1046534
  %v194 = vsel %vm193, %v181, %v192
  %vm195 = vcmask 1047559
  %v196 = vsel %vm195, %v182, %v194
  %vm197 = vcmask 64512
  %v198 = vsel %vm197, %v196, 0
  %200 = vmatpush.msra.mxu0 0.0
  %201 = vmatpush.msra.mxu0 0.0
  %202 = vmatpush.msra.mxu0 0.0
  %203 = vmatpush.msra.mxu0 0.0
  %204 = vmatpush.msra.mxu0 0.0
  %205 = vmatpush.msra.mxu0 0.0
  %206 = vmatpush.msra.mxu0 0.0
  %207 = vmatpush.msra.mxu0 0.0
  %208 = vmatpush.msra.mxu0 0.0
  %209 = vmatpush.msra.mxu0 0.0
  %210 = vmatpush.msra.mxu0 0.0
  %211 = vmatpush.msra.mxu0 0.0
  %212 = vmatpush.msra.mxu0 0.0
  %213 = vmatpush.msra.mxu0 0.0
  %214 = vmatpush.msra.mxu0 0.0
  %215 = vmatpush.msra.mxu0 %v166
  %216 = vmatmul.f32.gmra.mxu0 %v198
  %v217 = vpop.f32.mrf.mxu0
  %v218 = vadd.f32 0.0, %v217
  %219 = vdwg.mxu0
  %v228 = vperm.slane %v149, %v51
  %v229 = vperm.slane %v150, %v51
  %v230 = vperm.slane %v151, %v51
  %v231 = vperm.slane %v152, %v51
  %v232 = vperm.slane %v153, %v51
  %v233 = vperm.slane %v154, %v51
  %v234 = vperm.slane %v155, %v51
  %v235 = vperm.slane %v156, %v51
  %v236 = vsel %vm183, %v229, %v228
  %v237 = vsel %vm185, %v230, %v236
  %v238 = vsel %vm187, %v231, %v237
  %v239 = vsel %vm189, %v232, %v238
  %v240 = vsel %vm191, %v233, %v239
  %v241 = vsel %vm193, %v234, %v240
  %v242 = vsel %vm195, %v235, %v241
  %v243 = vsel %vm197, %v242, 0
  %245 = vmatpush.msra.mxu0 0.0
  %246 = vmatpush.msra.mxu0 0.0
  %247 = vmatpush.msra.mxu0 0.0
  %248 = vmatpush.msra.mxu0 0.0
  %249 = vmatpush.msra.mxu0 0.0
  %250 = vmatpush.msra.mxu0 0.0
  %251 = vmatpush.msra.mxu0 0.0
  %252 = vmatpush.msra.mxu0 0.0
  %253 = vmatpush.msra.mxu0 0.0
  %254 = vmatpush.msra.mxu0 0.0
  %255 = vmatpush.msra.mxu0 0.0
  %256 = vmatpush.msra.mxu0 0.0
  %257 = vmatpush.msra.mxu0 0.0
  %258 = vmatpush.msra.mxu0 0.0
  %259 = vmatpush.msra.mxu0 0.0
  %260 = vmatpush.msra.mxu0 %v165
  %261 = vmatmul.f32.gmra.mxu0 %v243
  %v262 = vpop.f32.mrf.mxu0
  %v263 = vadd.f32 %v218, %v262
  %264 = vdwg.mxu0
  %v265 = vld [vmem:[%s3] sm:$0xff]
  %v274 = vperm.slane %v110, %v51
  %v275 = vperm.slane %v112, %v51
  %v276 = vperm.slane %v114, %v51
  %v277 = vperm.slane %v116, %v51
  %v278 = vperm.slane %v118, %v51
  %v279 = vperm.slane %v120, %v51
  %v280 = vperm.slane %v122, %v51
  %v281 = vperm.slane %v124, %v51
  %v282 = vsel %vm183, %v275, %v274
  %v283 = vsel %vm185, %v276, %v282
  %v284 = vsel %vm187, %v277, %v283
  %v285 = vsel %vm189, %v278, %v284
  %v286 = vsel %vm191, %v279, %v285
  %v287 = vsel %vm193, %v280, %v286
  %v288 = vsel %vm195, %v281, %v287
  %v289 = vsel %vm197, %v288, 0
  %291 = vmatpush.msra.mxu0 0.0
  %292 = vmatpush.msra.mxu0 0.0
  %293 = vmatpush.msra.mxu0 0.0
  %294 = vmatpush.msra.mxu0 0.0
  %295 = vmatpush.msra.mxu0 0.0
  %296 = vmatpush.msra.mxu0 0.0
  %297 = vmatpush.msra.mxu0 0.0
  %298 = vmatpush.msra.mxu0 0.0
  %299 = vmatpush.msra.mxu0 0.0
  %300 = vmatpush.msra.mxu0 0.0
  %301 = vmatpush.msra.mxu0 0.0
  %302 = vmatpush.msra.mxu0 0.0
  %303 = vmatpush.msra.mxu0 0.0
  %304 = vmatpush.msra.mxu0 0.0
  %305 = vmatpush.msra.mxu0 0.0
  %306 = vmatpush.msra.mxu0 %v265
  %307 = vmatmul.f32.gmra.mxu0 %v289
  %v308 = vpop.f32.mrf.mxu0
  %v309 = vadd.f32 0.0, %v308
  %310 = vdwg.mxu0
  %v311 = vadd.f32 %v263, %v309
  %v312 = vld [vmem:[%s4] sm:$0xff]
  %v321 = vperm.slane %v134, %v51
  %v322 = vperm.slane %v136, %v51
  %v323 = vperm.slane %v138, %v51
  %v324 = vperm.slane %v140, %v51
  %v325 = vperm.slane %v142, %v51
  %v326 = vperm.slane %v144, %v51
  %v327 = vperm.slane %v146, %v51
  %v328 = vperm.slane %v148, %v51
  %v329 = vsel %vm183, %v322, %v321
  %v330 = vsel %vm185, %v323, %v329
  %v331 = vsel %vm187, %v324, %v330
  %v332 = vsel %vm189, %v325, %v331
  %v333 = vsel %vm191, %v326, %v332
  %v334 = vsel %vm193, %v327, %v333
  %v335 = vsel %vm195, %v328, %v334
  %v336 = vsel %vm197, %v335, 0
  %338 = vmatpush.msra.mxu0 0.0
  %339 = vmatpush.msra.mxu0 0.0
  %340 = vmatpush.msra.mxu0 0.0
  %341 = vmatpush.msra.mxu0 0.0
  %342 = vmatpush.msra.mxu0 0.0
  %343 = vmatpush.msra.mxu0 0.0
  %344 = vmatpush.msra.mxu0 0.0
  %345 = vmatpush.msra.mxu0 0.0
  %346 = vmatpush.msra.mxu0 0.0
  %347 = vmatpush.msra.mxu0 0.0
  %348 = vmatpush.msra.mxu0 0.0
  %349 = vmatpush.msra.mxu0 0.0
  %350 = vmatpush.msra.mxu0 0.0
  %351 = vmatpush.msra.mxu0 0.0
  %352 = vmatpush.msra.mxu0 0.0
  %353 = vmatpush.msra.mxu0 %v312
  %354 = vmatmul.f32.gmra.mxu0 %v336
  %v355 = vpop.f32.mrf.mxu0
  %v356 = vadd.f32 0.0, %v355
  %357 = vdwg.mxu0
  %v358 = vadd.f32 %v311, %v356
  %v359 = vld [vmem:[%s5] sm:$0x1]
  %v361 = vperm.slane %v359, 0
  %v363 = vadd.f32 %v358, %v361
  %v364 = vmax.f32 %v363, 0.0
  %v365 = vld [vmem:[%s6] sm:$0x3]
  %v366 = vld [vmem:[%s8] sm:$0x1]
  %v368 = vperm.slane %v366, 0
  %vm370 = vcmask 15360
  %v372 = vsel %vm370, %v364, 0
  %vm374 = vcmask 1041408
  %v376 = vsel %vm374, %v365, 0
  %378 = vmatpush.msra.mxu0 0.0
  %379 = vmatpush.msra.mxu0 0.0
  %380 = vmatpush.msra.mxu0 0.0
  %381 = vmatpush.msra.mxu0 0.0
  %382 = vmatpush.msra.mxu0 0.0
  %383 = vmatpush.msra.mxu0 0.0
  %384 = vmatpush.msra.mxu0 0.0
  %385 = vmatpush.msra.mxu0 0.0
  %386 = vmatpush.msra.mxu0 0.0
  %387 = vmatpush.msra.mxu0 0.0
  %388 = vmatpush.msra.mxu0 0.0
  %389 = vmatpush.msra.mxu0 0.0
  %390 = vmatpush.msra.mxu0 0.0
  %391 = vmatpush.msra.mxu0 0.0
  %392 = vmatpush.msra.mxu0 0.0
  %393 = vmatpush.msra.mxu0 %v376
  %394 = vmatmul.f32.gmra.mxu0 %v372
  %v395 = vpop.f32.mrf.mxu0
  %v396 = vadd.f32 %v368, %v395
  %397 = vdwg.mxu0
  %v398 = vxor.u32 %v396, 2147483648
  %v399 = vmul.f32 %v398, 1.442695
  %v400 = vpow.pop %v399
  %v401 = vadd.f32 %v400, 1.0
  %v402 = vrcp.pop %v401
  %v403 = vmul.f32 %v401, %v402
  %v404 = vsub.f32 1.0, %v403
  %v405 = vmul.f32 %v402, %v404
  %v406 = vadd.f32 %v402, %v405
  %vm407 = vweird.f32 %v401
  %vm408 = vweird.f32 %v402
  %vm409 = vmor %vm407, %vm408
  %v410 = vsel %vm409, %v402, %v406
  %v411 = vand.u32 2147483647, %v401
  %vm412 = vcmp.eq.f32.partialorder %v411, 8.507059e+37
  %v413 = vand.u32 %v401, 2147483648
  %v414 = vor.u32 1.1754944e-38, %v413
  %v415 = vsel %vm412, %v414, %v410
  %v416 = vmul.f32 1.0, %v415
  %v417 = vld [vmem:[%s7] sm:$0x3]
  %v418 = vld [vmem:[%s9] sm:$0x1]
  %v420 = vperm.slane %v418, 0
  %v423 = vsel %vm374, %v417, 0
  %425 = vmatpush.msra.mxu0 0.0
  %426 = vmatpush.msra.mxu0 0.0
  %427 = vmatpush.msra.mxu0 0.0
  %428 = vmatpush.msra.mxu0 0.0
  %429 = vmatpush.msra.mxu0 0.0
  %430 = vmatpush.msra.mxu0 0.0
  %431 = vmatpush.msra.mxu0 0.0
  %432 = vmatpush.msra.mxu0 0.0
  %433 = vmatpush.msra.mxu0 0.0
  %434 = vmatpush.msra.mxu0 0.0
  %435 = vmatpush.msra.mxu0 0.0
  %436 = vmatpush.msra.mxu0 0.0
  %437 = vmatpush.msra.mxu0 0.0
  %438 = vmatpush.msra.mxu0 0.0
  %439 = vmatpush.msra.mxu0 0.0
  %440 = vmatpush.msra.mxu0 %v423
  %441 = vmatmul.f32.gmra.mxu0 %v372
  %v442 = vpop.f32.mrf.mxu0
  %v443 = vadd.f32 %v420, %v442
  %444 = vdwg.mxu0
  %v445 = vxor.u32 %v443, 2147483648
  %v446 = vmul.f32 %v445, 1.442695
  %v447 = vpow.pop %v446
  %v448 = vadd.f32 %v447, 1.0
  %v449 = vrcp.pop %v448
  %v450 = vmul.f32 %v448, %v449
  %v451 = vsub.f32 1.0, %v450
  %v452 = vmul.f32 %v449, %v451
  %v453 = vadd.f32 %v449, %v452
  %vm454 = vweird.f32 %v448
  %vm455 = vweird.f32 %v449
  %vm456 = vmor %vm454, %vm455
  %v457 = vsel %vm456, %v449, %v453
  %v458 = vand.u32 2147483647, %v448
  %vm459 = vcmp.eq.f32.partialorder %v458, 8.507059e+37
  %v460 = vand.u32 %v448, 2147483648
  %v461 = vor.u32 1.1754944e-38, %v460
  %v462 = vsel %vm459, %v461, %v457
  %v463 = vmul.f32 1.0, %v462
  %v464 = vperm.slane %v416, 0
  %v465 = vlaneseq
  %v466 = vshrl.u32 %v465, 7
  %468 = vset.pattern.permute.xlu0 %v466
  %469 = vperm.xlu0 %468, %v464
  %v470 = vpop.permute.xlu0 %469
  %v471 = vperm.slane %v416, 1
  %v472 = vlaneseq
  %v473 = vshrl.u32 %v472, 7
  %475 = vset.pattern.permute.xlu0 %v473
  %476 = vperm.xlu0 %475, %v471
  %v477 = vpop.permute.xlu0 %476
  %v478 = vperm.slane %v416, 2
  %v479 = vlaneseq
  %v480 = vshrl.u32 %v479, 7
  %482 = vset.pattern.permute.xlu0 %v480
  %483 = vperm.xlu0 %482, %v478
  %v484 = vpop.permute.xlu0 %483
  %v485 = vperm.slane %v416, 3
  %v486 = vlaneseq
  %v487 = vshrl.u32 %v486, 7
  %489 = vset.pattern.permute.xlu0 %v487
  %490 = vperm.xlu0 %489, %v485
  %v491 = vpop.permute.xlu0 %490
  %v492 = vperm.slane %v416, 4
  %v493 = vlaneseq
  %v494 = vshrl.u32 %v493, 7
  %496 = vset.pattern.permute.xlu0 %v494
  %497 = vperm.xlu0 %496, %v492
  %v498 = vpop.permute.xlu0 %497
  %v499 = vperm.slane %v416, 5
  %v500 = vlaneseq
  %v501 = vshrl.u32 %v500, 7
  %503 = vset.pattern.permute.xlu0 %v501
  %504 = vperm.xlu0 %503, %v499
  %v505 = vpop.permute.xlu0 %504
  %v506 = vperm.slane %v416, 6
  %v507 = vlaneseq
  %v508 = vshrl.u32 %v507, 7
  %510 = vset.pattern.permute.xlu0 %v508
  %511 = vperm.xlu0 %510, %v506
  %v512 = vpop.permute.xlu0 %511
  %v513 = vperm.slane %v416, 7
  %v514 = vlaneseq
  %v515 = vshrl.u32 %v514, 7
  %517 = vset.pattern.permute.xlu0 %v515
  %518 = vperm.xlu0 %517, %v513
  %v519 = vpop.permute.xlu0 %518
  %v520 = vperm.slane %v463, 0
  %v521 = vlaneseq
  %v522 = vshrl.u32 %v521, 7
  %524 = vset.pattern.permute.xlu0 %v522
  %525 = vperm.xlu0 %524, %v520
  %v526 = vpop.permute.xlu0 %525
  %v527 = vperm.slane %v463, 1
  %v528 = vlaneseq
  %v529 = vshrl.u32 %v528, 7
  %531 = vset.pattern.permute.xlu0 %v529
  %532 = vperm.xlu0 %531, %v527
  %v533 = vpop.permute.xlu0 %532
  %v534 = vperm.slane %v463, 2
  %v535 = vlaneseq
  %v536 = vshrl.u32 %v535, 7
  %538 = vset.pattern.permute.xlu0 %v536
  %539 = vperm.xlu0 %538, %v534
  %v540 = vpop.permute.xlu0 %539
  %v541 = vperm.slane %v463, 3
  %v542 = vlaneseq
  %v543 = vshrl.u32 %v542, 7
  %545 = vset.pattern.permute.xlu0 %v543
  %546 = vperm.xlu0 %545, %v541
  %v547 = vpop.permute.xlu0 %546
  %v548 = vperm.slane %v463, 4
  %v549 = vlaneseq
  %v550 = vshrl.u32 %v549, 7
  %552 = vset.pattern.permute.xlu0 %v550
  %553 = vperm.xlu0 %552, %v548
  %v554 = vpop.permute.xlu0 %553
  %v555 = vperm.slane %v463, 5
  %v556 = vlaneseq
  %v557 = vshrl.u32 %v556, 7
  %559 = vset.pattern.permute.xlu0 %v557
  %560 = vperm.xlu0 %559, %v555
  %v561 = vpop.permute.xlu0 %560
  %v562 = vperm.slane %v463, 6
  %v563 = vlaneseq
  %v564 = vshrl.u32 %v563, 7
  %566 = vset.pattern.permute.xlu0 %v564
  %567 = vperm.xlu0 %566, %v562
  %v568 = vpop.permute.xlu0 %567
  %v569 = vperm.slane %v463, 7
  %v570 = vlaneseq
  %v571 = vshrl.u32 %v570, 7
  %573 = vset.pattern.permute.xlu0 %v571
  %574 = vperm.xlu0 %573, %v569
  %v575 = vpop.permute.xlu0 %574
  %v576 = vsel %vm52, %v470, %v526
  %v577 = vsel %vm52, %v477, %v533
  %v578 = vsel %vm52, %v484, %v540
  %v579 = vsel %vm52, %v491, %v547
  %v580 = vsel %vm52, %v498, %v554
  %v581 = vsel %vm52, %v505, %v561
  %v582 = vsel %vm52, %v512, %v568
  %v583 = vsel %vm52, %v519, %v575
  %v584 = vmul.f32 %v42, %v576
  %v585 = vmul.f32 %v43, %v577
  %v586 = vmul.f32 %v44, %v578
  %v587 = vmul.f32 %v45, %v579
  %v588 = vmul.f32 %v46, %v580
  %v589 = vmul.f32 %v47, %v581
  %v590 = vmul.f32 %v48, %v582
  %v591 = vmul.f32 %v49, %v583
  %v592 = vrot.slane %v584, 4
  %v593 = vadd.f32 %v584, %v592
  %v594 = vrot.slane %v593, 2
  %v595 = vadd.f32 %v593, %v594
  %v596 = vrot.slane %v595, 1
  %v597 = vadd.f32 %v595, %v596
  %v598 = vrot.slane %v585, 4
  %v599 = vadd.f32 %v585, %v598
  %v600 = vrot.slane %v599, 2
  %v601 = vadd.f32 %v599, %v600
  %v602 = vrot.slane %v601, 1
  %v603 = vadd.f32 %v601, %v602
  %v604 = vrot.slane %v586, 4
  %v605 = vadd.f32 %v586, %v604
  %v606 = vrot.slane %v605, 2
  %v607 = vadd.f32 %v605, %v606
  %v608 = vrot.slane %v607, 1
  %v609 = vadd.f32 %v607, %v608
  %v610 = vrot.slane %v587, 4
  %v611 = vadd.f32 %v587, %v610
  %v612 = vrot.slane %v611, 2
  %v613 = vadd.f32 %v611, %v612
  %v614 = vrot.slane %v613, 1
  %v615 = vadd.f32 %v613, %v614
  %v616 = vrot.slane %v588, 4
  %v617 = vadd.f32 %v588, %v616
  %v618 = vrot.slane %v617, 2
  %v619 = vadd.f32 %v617, %v618
  %v620 = vrot.slane %v619, 1
  %v621 = vadd.f32 %v619, %v620
  %v622 = vrot.slane %v589, 4
  %v623 = vadd.f32 %v589, %v622
  %v624 = vrot.slane %v623, 2
  %v625 = vadd.f32 %v623, %v624
  %v626 = vrot.slane %v625, 1
  %v627 = vadd.f32 %v625, %v626
  %v628 = vrot.slane %v590, 4
  %v629 = vadd.f32 %v590, %v628
  %v630 = vrot.slane %v629, 2
  %v631 = vadd.f32 %v629, %v630
  %v632 = vrot.slane %v631, 1
  %v633 = vadd.f32 %v631, %v632
  %v634 = vrot.slane %v591, 4
  %v635 = vadd.f32 %v591, %v634
  %v636 = vrot.slane %v635, 2
  %v637 = vadd.f32 %v635, %v636
  %v638 = vrot.slane %v637, 1
  %v639 = vadd.f32 %v637, %v638
  %v640 = vrot.slane %v584, 4
  %v641 = vmax.f32 %v584, %v640
  %v642 = vrot.slane %v641, 2
  %v643 = vmax.f32 %v641, %v642
  %v644 = vrot.slane %v643, 1
  %v645 = vmax.f32 %v643, %v644
  %v646 = vrot.slane %v585, 4
  %v647 = vmax.f32 %v585, %v646
  %v648 = vrot.slane %v647, 2
  %v649 = vmax.f32 %v647, %v648
  %v650 = vrot.slane %v649, 1
  %v651 = vmax.f32 %v649, %v650
  %v652 = vrot.slane %v586, 4
  %v653 = vmax.f32 %v586, %v652
  %v654 = vrot.slane %v653, 2
  %v655 = vmax.f32 %v653, %v654
  %v656 = vrot.slane %v655, 1
  %v657 = vmax.f32 %v655, %v656
  %v658 = vrot.slane %v587, 4
  %v659 = vmax.f32 %v587, %v658
  %v660 = vrot.slane %v659, 2
  %v661 = vmax.f32 %v659, %v660
  %v662 = vrot.slane %v661, 1
  %v663 = vmax.f32 %v661, %v662
  %v664 = vrot.slane %v588, 4
  %v665 = vmax.f32 %v588, %v664
  %v666 = vrot.slane %v665, 2
  %v667 = vmax.f32 %v665, %v666
  %v668 = vrot.slane %v667, 1
  %v669 = vmax.f32 %v667, %v668
  %v670 = vrot.slane %v589, 4
  %v671 = vmax.f32 %v589, %v670
  %v672 = vrot.slane %v671, 2
  %v673 = vmax.f32 %v671, %v672
  %v674 = vrot.slane %v673, 1
  %v675 = vmax.f32 %v673, %v674
  %v676 = vrot.slane %v590, 4
  %v677 = vmax.f32 %v590, %v676
  %v678 = vrot.slane %v677, 2
  %v679 = vmax.f32 %v677, %v678
  %v680 = vrot.slane %v679, 1
  %v681 = vmax.f32 %v679, %v680
  %v682 = vrot.slane %v591, 4
  %v683 = vmax.f32 %v591, %v682
  %v684 = vrot.slane %v683, 2
  %v685 = vmax.f32 %v683, %v684
  %v686 = vrot.slane %v685, 1
  %v687 = vmax.f32 %v685, %v686
  %v696 = vsel %vm183, %v603, %v597
  %v697 = vsel %vm185, %v609, %v696
  %v698 = vsel %vm187, %v615, %v697
  %v699 = vsel %vm189, %v621, %v698
  %v700 = vsel %vm191, %v627, %v699
  %v701 = vsel %vm193, %v633, %v700
  %v702 = vsel %vm195, %v639, %v701
  %704 = vrot.lane.b32.xlu0 %v702, 64
  %v705 = vpop.permute.xlu0 %704
  %v707 = vrot.slane %v705, 1
  %v708 = vrot.slane %v705, 2
  %v709 = vrot.slane %v705, 3
  %v710 = vrot.slane %v705, 4
  %v711 = vrot.slane %v705, 5
  %v712 = vrot.slane %v705, 6
  %v713 = vrot.slane %v705, 7
  %v722 = vadd.f32 %v597, %v705
  %v723 = vadd.f32 %v603, %v707
  %v724 = vadd.f32 %v609, %v708
  %v725 = vadd.f32 %v615, %v709
  %v726 = vadd.f32 %v621, %v710
  %v727 = vadd.f32 %v627, %v711
  %v728 = vadd.f32 %v633, %v712
  %v729 = vadd.f32 %v639, %v713
  %v738 = vsel %vm183, %v651, %v645
  %v739 = vsel %vm185, %v657, %v738
  %v740 = vsel %vm187, %v663, %v739
  %v741 = vsel %vm189, %v669, %v740
  %v742 = vsel %vm191, %v675, %v741
  %v743 = vsel %vm193, %v681, %v742
  %v744 = vsel %vm195, %v687, %v743
  %746 = vrot.lane.b32.xlu0 %v744, 64
  %v747 = vpop.permute.xlu0 %746
  %v749 = vrot.slane %v747, 1
  %v750 = vrot.slane %v747, 2
  %v751 = vrot.slane %v747, 3
  %v752 = vrot.slane %v747, 4
  %v753 = vrot.slane %v747, 5
  %v754 = vrot.slane %v747, 6
  %v755 = vrot.slane %v747, 7
  %v764 = vmax.f32 %v645, %v747
  %v765 = vmax.f32 %v651, %v749
  %v766 = vmax.f32 %v657, %v750
  %v767 = vmax.f32 %v663, %v751
  %v768 = vmax.f32 %v669, %v752
  %v769 = vmax.f32 %v675, %v753
  %v770 = vmax.f32 %v681, %v754
  %v771 = vmax.f32 %v687, %v755
  %v772 = vmul.f32 %v722, 0.0625
  %v773 = vmul.f32 %v723, 0.0625
  %v774 = vmul.f32 %v724, 0.0625
  %v775 = vmul.f32 %v725, 0.0625
  %v776 = vmul.f32 %v726, 0.0625
  %v777 = vmul.f32 %v727, 0.0625
  %v778 = vmul.f32 %v728, 0.0625
  %v779 = vmul.f32 %v729, 0.0625
  %v788 = vrot.slane %v773, 7
  %v789 = vsel %vm183, %v788, %v772
  %v790 = vrot.slane %v774, 6
  %v791 = vsel %vm185, %v790, %v789
  %v792 = vrot.slane %v775, 5
  %v793 = vsel %vm187, %v792, %v791
  %v794 = vrot.slane %v776, 4
  %v795 = vsel %vm189, %v794, %v793
  %v796 = vrot.slane %v777, 3
  %v797 = vsel %vm191, %v796, %v795
  %v798 = vrot.slane %v778, 2
  %v799 = vsel %vm193, %v798, %v797
  %v800 = vrot.slane %v779, 1
  %v801 = vsel %vm195, %v800, %v799
  %v811 = vrot.slane %v765, 7
  %v812 = vsel %vm183, %v811, %v764
  %v813 = vrot.slane %v766, 6
  %v814 = vsel %vm185, %v813, %v812
  %v815 = vrot.slane %v767, 5
  %v816 = vsel %vm187, %v815, %v814
  %v817 = vrot.slane %v768, 4
  %v818 = vsel %vm189, %v817, %v816
  %v819 = vrot.slane %v769, 3
  %v820 = vsel %vm191, %v819, %v818
  %v821 = vrot.slane %v770, 2
  %v822 = vsel %vm193, %v821, %v820
  %v823 = vrot.slane %v771, 1
  %v824 = vsel %vm195, %v823, %v822
  %v826 = vsel %vm52, %v801, %v824
  %v827 = vld [vmem:[%s10] sm:$0xff]
  %v828 = vld [vmem:[%s10 + $0x8] sm:$0xff]
  %v829 = vld [vmem:[%s10 + $0x10] sm:$0xff]
  %v830 = vld [vmem:[%s10 + $0x18] sm:$0xff]
  %v831 = vld [vmem:[%s10 + $0x20] sm:$0xff]
  %v832 = vld [vmem:[%s10 + $0x28] sm:$0xff]
  %v833 = vld [vmem:[%s10 + $0x30] sm:$0xff]
  %v834 = vld [vmem:[%s10 + $0x38] sm:$0xff]
  %v835 = vld [vmem:[%s10 + $0x40] sm:$0xff]
  %v836 = vld [vmem:[%s10 + $0x48] sm:$0xff]
  %v837 = vld [vmem:[%s10 + $0x50] sm:$0xff]
  %v838 = vld [vmem:[%s10 + $0x58] sm:$0xff]
  %v839 = vld [vmem:[%s10 + $0x60] sm:$0xff]
  %v840 = vld [vmem:[%s10 + $0x68] sm:$0xff]
  %v841 = vld [vmem:[%s10 + $0x70] sm:$0xff]
  %v842 = vld [vmem:[%s10 + $0x78] sm:$0xff]
  %s843 = sld [smem:[#allocation2]]
  %v844 = vstv %s843
  %845 = vmatpush.msra.mxu0 %v842
  %846 = vmatpush.msra.mxu0 %v841
  %847 = vmatpush.msra.mxu0 %v840
  %848 = vmatpush.msra.mxu0 %v839
  %849 = vmatpush.msra.mxu0 %v838
  %850 = vmatpush.msra.mxu0 %v837
  %851 = vmatpush.msra.mxu0 %v836
  %852 = vmatpush.msra.mxu0 %v835
  %853 = vmatpush.msra.mxu0 %v834
  %854 = vmatpush.msra.mxu0 %v833
  %855 = vmatpush.msra.mxu0 %v832
  %856 = vmatpush.msra.mxu0 %v831
  %857 = vmatpush.msra.mxu0 %v830
  %858 = vmatpush.msra.mxu0 %v829
  %859 = vmatpush.msra.mxu0 %v828
  %860 = vmatpush.msra.mxu0 %v827
  %861 = vmatmul.f32.gmra.mxu0 %v826
  %v862 = vpop.f32.mrf.mxu0
  %v863 = vadd.f32 %v844, %v862
  %864 = vdwg.mxu0
  %v865 = vxor.u32 %v863, 2147483648
  %v866 = vmul.f32 %v865, 1.442695
  %v867 = vpow.pop %v866
  %v868 = vadd.f32 %v867, 1.0
  %v869 = vrcp.pop %v868
  %v870 = vmul.f32 %v868, %v869
  %v871 = vsub.f32 1.0, %v870
  %v872 = vmul.f32 %v869, %v871
  %v873 = vadd.f32 %v869, %v872
  %vm874 = vweird.f32 %v868
  %vm875 = vweird.f32 %v869
  %vm876 = vmor %vm874, %vm875
  %v877 = vsel %vm876, %v869, %v873
  %v878 = vand.u32 2147483647, %v868
  %vm879 = vcmp.eq.f32.partialorder %v878, 8.507059e+37
  %v880 = vand.u32 %v868, 2147483648
  %v881 = vor.u32 1.1754944e-38, %v880
  %v882 = vsel %vm879, %v881, %v877
  %v883 = vmul.f32 1.0, %v882
  %v885 = vrot.slane %v883, 1
  %v886 = vrot.slane %v883, 2
  %v887 = vrot.slane %v883, 3
  %v888 = vrot.slane %v883, 4
  %v889 = vrot.slane %v883, 5
  %v890 = vrot.slane %v883, 6
  %v891 = vrot.slane %v883, 7
  %v892 = vperm.slane %v883, 0
  %v893 = vperm.slane %v885, 0
  %v894 = vperm.slane %v886, 0
  %v895 = vperm.slane %v887, 0
  %v896 = vperm.slane %v888, 0
  %v897 = vperm.slane %v889, 0
  %v898 = vperm.slane %v890, 0
  %v899 = vperm.slane %v891, 0
  %v908 = vmul.f32 %v584, %v892
  %v909 = vmul.f32 %v585, %v893
  %v910 = vmul.f32 %v586, %v894
  %v911 = vmul.f32 %v587, %v895
  %v912 = vmul.f32 %v588, %v896
  %v913 = vmul.f32 %v589, %v897
  %v914 = vmul.f32 %v590, %v898
  %v915 = vmul.f32 %v591, %v899
  %916 = vst [vmem:[%s12] sm:$0xff] %v908
  %917 = vst [vmem:[%s12 + $0x8] sm:$0xff] %v909
  %918 = vst [vmem:[%s12 + $0x10] sm:$0xff] %v910
  %919 = vst [vmem:[%s12 + $0x18] sm:$0xff] %v911
  %920 = vst [vmem:[%s12 + $0x20] sm:$0xff] %v912
  %921 = vst [vmem:[%s12 + $0x28] sm:$0xff] %v913
  %922 = vst [vmem:[%s12 + $0x30] sm:$0xff] %v914
  %923 = vst [vmem:[%s12 + $0x38] sm:$0xff] %v915
  // Predicated region
  $region50: #{spatial_channel_attention.1} parent=0 // pred_check
    _
  $region51: #{spatial_channel_attention.1} parent=0 // pred_check_branch
    %925 = sbr.rel (0) target = $region53
  $region52: #{spatial_channel_attention.1} parent=0 // pred_region
    _
  $region53: #{spatial_channel_attention.1} parent=0 // pred_fallthru
    _
  // Predicated region
  $region54: #{spatial_channel_attention.1} parent=0 // pred_check
    _
  $region55: #{spatial_channel_attention.1} parent=0 // pred_check_branch
    %927 = sbr.rel (0) target = $region57
  $region56: #{spatial_channel_attention.1} parent=0 // pred_region
    _
  $region57: #{spatial_channel_attention.1} parent=0 // pred_fallthru
    _

</llo_original>
